<compile_context>
chip_gen: v7x
topology: tpu7x:2x2x1
jax: 0.10.0
libtpu: 0.0.40
codegen_flags: <defaults>
</compile_context>

<pallas_src>
import math

import jax
import jax.numpy as jnp
from jax.experimental import pallas as pl
from jax.experimental.pallas import tpu as pltpu

_LANE = 128
_TM_MAX = 2048      # rows of 128 lanes per grid step (~19.4 MiB double-buffered)
_SPLIT_MIN = 1024   # rows: above this, split into >=2 blocks so both v7x TCs work


def _round_up(x, m):
    return ((x + m - 1) // m) * m


def _eltwise_kernel(x_ref, add_ref, sub_ref, mul_ref, div_ref, cmp_ref):
    # x_ref: (5, TM, 128) VMEM tile; each x_ref[i] is a lane-dense (TM, 128) slab.
    a = x_ref[0]
    b = x_ref[1]
    c = x_ref[2]
    d = x_ref[3]
    e = x_ref[4]
    add_ref[...] = a + b
    sub_ref[...] = b - c
    mul_ref[...] = c * d
    # Exact divide kept for parity with PyTorch true division (1e-6 tolerance);
    # the 1e-5 epsilon is literal in the PtModule spec.
    div_ref[...] = d / (e + 1e-05)
    # Comparison emitted as int8 (0/1); cast to bool in the wrapper.
    # TODO(synk): emit jnp.bool_ directly from the kernel once i1-typed outputs
    # are robust in Mosaic, dropping the (small) post-kernel cast pass.
    cmp_ref[...] = (a > e).astype(jnp.int8)


@jax.jit
def pt_module_forward(x):
    """x: (>=5, C, H, W) float32 -> (add, sub, mul, div, cmp_bool), each (C, H, W)."""
    # Contract: only slices 0..4 are used; extra leading slices are ignored.
    assert x.shape[0] >= 5, "forward indexes input_tensor[0..4]"
    slice_shape = x.shape[1:]
    n = math.prod(slice_shape)

    # x[:5] is a no-op view when shape[0] == 5; reshape is a free bitcast.
    x2d = x[:5].reshape(5, n)

    if n % _LANE != 0:
        # TODO(synk): handle ragged n without a pad copy (e.g. 2-D (5, n) blocks);
        # this rare path costs one extra HBM copy of the input + output slices.
        n_pad = _round_up(n, _LANE)
        x2d = jnp.pad(x2d, ((0, 0), (0, n_pad - n)))   # zeros keep div finite
    else:
        n_pad = n

    m = n_pad // _LANE
    x3d = x2d.reshape(5, m, _LANE)   # lane-dense (5, M, 128), free view

    # Row-tile selection. No rounding of M: Pallas masks the ragged last block.
    #   * big inputs: TM=2048 (multiple of 32 -> safe for the int8 output tiling)
    #   * mid-size:   split into >=2 blocks so both v7x TensorCores get work
    #   * tiny:       single block == full array extent (exempt from alignment)
    if m > _TM_MAX:
        tm = _TM_MAX
    elif m >= _SPLIT_MIN:
        tm = _round_up(pl.cdiv(m, 2), 32)
    else:
        tm = m
    grid = (pl.cdiv(m, tm),)

    f32_out = jax.ShapeDtypeStruct((m, _LANE), x.dtype)
    out_shapes = (
        f32_out,                                        # add
        f32_out,                                        # sub
        f32_out,                                        # mul
        f32_out,                                        # div
        jax.ShapeDtypeStruct((m, _LANE), jnp.int8),     # comparison bits
    )
    out_spec = pl.BlockSpec((tm, _LANE), lambda i: (i, 0))

    add_r, sub_r, mul_r, div_r, cmp_r = pl.pallas_call(
        _eltwise_kernel,
        out_shape=out_shapes,
        grid=grid,
        in_specs=[pl.BlockSpec((5, tm, _LANE), lambda i: (0, i, 0))],
        out_specs=(out_spec,) * 5,
        compiler_params=pltpu.CompilerParams(
            dimension_semantics=("parallel",),
            vmem_limit_bytes=32 * 1024 * 1024,   # TM=2048 needs > v5e's 16 MiB default
        ),
        cost_estimate=pl.CostEstimate(
            flops=6 * n, transcendentals=0, bytes_accessed=37 * n),
    )(x3d)

    def _unflatten(y):
        # Free view when no padding was required (the common, n % 128 == 0 case).
        if n_pad != n:
            y = y.reshape(n_pad)[:n]
        return y.reshape(slice_shape)

    return (
        _unflatten(add_r),
        _unflatten(sub_r),
        _unflatten(mul_r),
        _unflatten(div_r),
        _unflatten(cmp_r).astype(jnp.bool_),
    )


if __name__ == "__main__":
    key = jax.random.PRNGKey(0)
    # Leading axis of 5 slices (as the forward requires), each slice (4, 16, 16).
    x = jax.random.normal(key, (5, 4, 16, 16), dtype=jnp.float32)

    outs = pt_module_forward(x)
    outs = jax.block_until_ready(outs)

    # Pure-JAX reference (correctness gate).
    ref = (
        x[0] + x[1],
        x[1] - x[2],
        x[2] * x[3],
        x[3] / (x[4] + 1e-05),
        x[0] > x[4],
    )
    for got, want in zip(outs[:4], ref[:4]):
        assert got.dtype == want.dtype
        assert got.shape == want.shape
        assert jnp.allclose(got, want, rtol=1e-6, atol=1e-6)
    assert outs[4].dtype == jnp.bool_
    assert outs[4].shape == ref[4].shape
    assert bool(jnp.all(outs[4] == ref[4]))

    print("KERNEL_OK")
</pallas_src>

<mosaic_0001>
module attributes {stable_mosaic.version = 11 : i64} {
  func.func @_eltwise_kernel(%arg0: i32, %arg1: memref<5x8x128xf32, #tpu.memory_space<vmem>>, %arg2: memref<8x128xf32, #tpu.memory_space<vmem>>, %arg3: memref<8x128xf32, #tpu.memory_space<vmem>>, %arg4: memref<8x128xf32, #tpu.memory_space<vmem>>, %arg5: memref<8x128xf32, #tpu.memory_space<vmem>>, %arg6: memref<8x128xi8, #tpu.memory_space<vmem>>) attributes {dimension_semantics = [#tpu.dimension_semantics<parallel>], iteration_bounds = array<i64: 1>, scalar_prefetch = 0 : i64, scratch_operands = 0 : i64, tpu.core_type = #tpu.core_type<tc>, window_params = [{transform_indices = @transform_0, window_bounds = array<i64: 5, 8, 128>}, {transform_indices = @transform_1, window_bounds = array<i64: 8, 128>}, {transform_indices = @transform_2, window_bounds = array<i64: 8, 128>}, {transform_indices = @transform_3, window_bounds = array<i64: 8, 128>}, {transform_indices = @transform_4, window_bounds = array<i64: 8, 128>}, {transform_indices = @transform_5, window_bounds = array<i64: 8, 128>}]} {
    %c0 = arith.constant 0 : index
    %c0_0 = arith.constant 0 : index
    %c0_1 = arith.constant 0 : index
    %0 = vector.load %arg1[%c0, %c0_0, %c0_1] : memref<5x8x128xf32, #tpu.memory_space<vmem>>, vector<1x8x128xf32>
    %1 = vector.shape_cast %0 : vector<1x8x128xf32> to vector<8x128xf32>
    %c1 = arith.constant 1 : index
    %c0_2 = arith.constant 0 : index
    %c0_3 = arith.constant 0 : index
    %2 = vector.load %arg1[%c1, %c0_2, %c0_3] : memref<5x8x128xf32, #tpu.memory_space<vmem>>, vector<1x8x128xf32>
    %3 = vector.shape_cast %2 : vector<1x8x128xf32> to vector<8x128xf32>
    %c2 = arith.constant 2 : index
    %c0_4 = arith.constant 0 : index
    %c0_5 = arith.constant 0 : index
    %4 = vector.load %arg1[%c2, %c0_4, %c0_5] : memref<5x8x128xf32, #tpu.memory_space<vmem>>, vector<1x8x128xf32>
    %5 = vector.shape_cast %4 : vector<1x8x128xf32> to vector<8x128xf32>
    %c3 = arith.constant 3 : index
    %c0_6 = arith.constant 0 : index
    %c0_7 = arith.constant 0 : index
    %6 = vector.load %arg1[%c3, %c0_6, %c0_7] : memref<5x8x128xf32, #tpu.memory_space<vmem>>, vector<1x8x128xf32>
    %7 = vector.shape_cast %6 : vector<1x8x128xf32> to vector<8x128xf32>
    %c4 = arith.constant 4 : index
    %c0_8 = arith.constant 0 : index
    %c0_9 = arith.constant 0 : index
    %8 = vector.load %arg1[%c4, %c0_8, %c0_9] : memref<5x8x128xf32, #tpu.memory_space<vmem>>, vector<1x8x128xf32>
    %9 = vector.shape_cast %8 : vector<1x8x128xf32> to vector<8x128xf32>
    %10 = arith.addf %1, %3 : vector<8x128xf32>
    %c0_10 = arith.constant 0 : index
    %c0_11 = arith.constant 0 : index
    %11 = vector.load %arg2[%c0_10, %c0_11] : memref<8x128xf32, #tpu.memory_space<vmem>>, vector<8x128xf32>
    tpu.vector_store %arg2[%c0_10, %c0_11], %10 {strides = array<i32>} : memref<8x128xf32, #tpu.memory_space<vmem>>, vector<8x128xf32>,
    %12 = arith.subf %3, %5 : vector<8x128xf32>
    %c0_12 = arith.constant 0 : index
    %c0_13 = arith.constant 0 : index
    %13 = vector.load %arg3[%c0_12, %c0_13] : memref<8x128xf32, #tpu.memory_space<vmem>>, vector<8x128xf32>
    tpu.vector_store %arg3[%c0_12, %c0_13], %12 {strides = array<i32>} : memref<8x128xf32, #tpu.memory_space<vmem>>, vector<8x128xf32>,
    %14 = arith.mulf %5, %7 : vector<8x128xf32>
    %c0_14 = arith.constant 0 : index
    %c0_15 = arith.constant 0 : index
    %15 = vector.load %arg4[%c0_14, %c0_15] : memref<8x128xf32, #tpu.memory_space<vmem>>, vector<8x128xf32>
    tpu.vector_store %arg4[%c0_14, %c0_15], %14 {strides = array<i32>} : memref<8x128xf32, #tpu.memory_space<vmem>>, vector<8x128xf32>,
    %cst = arith.constant 9.99999974E-6 : f32
    %16 = vector.broadcast %cst : f32 to vector<8x128xf32>
    %17 = arith.addf %9, %16 : vector<8x128xf32>
    %18 = arith.divf %7, %17 : vector<8x128xf32>
    %c0_16 = arith.constant 0 : index
    %c0_17 = arith.constant 0 : index
    %19 = vector.load %arg5[%c0_16, %c0_17] : memref<8x128xf32, #tpu.memory_space<vmem>>, vector<8x128xf32>
    tpu.vector_store %arg5[%c0_16, %c0_17], %18 {strides = array<i32>} : memref<8x128xf32, #tpu.memory_space<vmem>>, vector<8x128xf32>,
    %20 = arith.cmpf ogt, %1, %9 : vector<8x128xf32>
    %21 = arith.extui %20 : vector<8x128xi1> to vector<8x128xi8>
    %c0_18 = arith.constant 0 : index
    %c0_19 = arith.constant 0 : index
    %22 = vector.load %arg6[%c0_18, %c0_19] : memref<8x128xi8, #tpu.memory_space<vmem>>, vector<8x128xi8>
    tpu.vector_store %arg6[%c0_18, %c0_19], %21 {strides = array<i32>} : memref<8x128xi8, #tpu.memory_space<vmem>>, vector<8x128xi8>,
    return
  }
  func.func @transform_0(%arg0: i32) -> (i32, i32, i32) {
    %c0_i32 = arith.constant 0 : i32
    %c0_i32_0 = arith.constant 0 : i32
    %c0_i32_1 = arith.constant 0 : i32
    return %c0_i32, %arg0, %c0_i32_0 : i32, i32, i32
  }
  func.func @transform_1(%arg0: i32) -> (i32, i32) {
    %c0_i32 = arith.constant 0 : i32
    %c0_i32_0 = arith.constant 0 : i32
    return %arg0, %c0_i32 : i32, i32
  }
  func.func @transform_2(%arg0: i32) -> (i32, i32) {
    %c0_i32 = arith.constant 0 : i32
    %c0_i32_0 = arith.constant 0 : i32
    return %arg0, %c0_i32 : i32, i32
  }
  func.func @transform_3(%arg0: i32) -> (i32, i32) {
    %c0_i32 = arith.constant 0 : i32
    %c0_i32_0 = arith.constant 0 : i32
    return %arg0, %c0_i32 : i32, i32
  }
  func.func @transform_4(%arg0: i32) -> (i32, i32) {
    %c0_i32 = arith.constant 0 : i32
    %c0_i32_0 = arith.constant 0 : i32
    return %arg0, %c0_i32 : i32, i32
  }
  func.func @transform_5(%arg0: i32) -> (i32, i32) {
    %c0_i32 = arith.constant 0 : i32
    %c0_i32_0 = arith.constant 0 : i32
    return %arg0, %c0_i32 : i32, i32
  }
}

</mosaic_0001>

<llo_original>
// kernel: pt_module_forward.1
$region0: #{pt_module_forward.1}
  #allocation0 [shape = 'u32[]', space=smem, size = 0x4, offset = 0x4, fixed_abs, tag = 'smem constant byte address 0x4 - core index']
  #allocation1 [shape = 'u32[144,128]{1,0:T(1,128)}', space=vmem, size = 0x12000, scoped, tag = 'internal scratch']
  %s0 = inlined_call_operand.vmem [shape: f32[5,8,128], index: 0, kind: input, shape index: {}]
  %s1 = inlined_call_operand.vmem [shape: f32[8,128], index: 1, kind: output, shape index: {0}]
  %s2 = inlined_call_operand.vmem [shape: f32[8,128], index: 2, kind: output, shape index: {1}]
  %s3 = inlined_call_operand.vmem [shape: f32[8,128], index: 3, kind: output, shape index: {2}]
  %s4 = inlined_call_operand.vmem [shape: f32[8,128], index: 4, kind: output, shape index: {3}]
  %s5 = inlined_call_operand.vmem [shape: s8[8,128], index: 5, kind: output, shape index: {4}]
  %6 = xla_tuple %s1, %s2, %s3, %s4, %s5
  %s7 = sld [smem:[#allocation0]]
  $region46: #{pt_module_forward.1} parent=0
    _
  %s9 = ssub.s32 1, %s7
  %s10 = scalar_select 0, %s9, %s7
  // Predicated region
  $region2: #{pt_module_forward.1} parent=0 // pred_check
    _
  $region3: #{pt_module_forward.1} parent=0 // pred_check_branch
    %12 = sbr.rel (0) target = $region5
  $region4: #{pt_module_forward.1} parent=0 // pred_region
    _
  $region5: #{pt_module_forward.1} parent=0 // pred_fallthru
    _
  %v15 = vld [vmem:[%s0] sm:$0xff]
  %s16 = scalar_lea.vmem %s0, 8
  %v17 = vld [vmem:[%s16] sm:$0xff]
  %s18 = scalar_lea.vmem %s0, 16
  %v19 = vld [vmem:[%s18] sm:$0xff]
  %s20 = scalar_lea.vmem %s0, 24
  %v21 = vld [vmem:[%s20] sm:$0xff]
  %s22 = scalar_lea.vmem %s0, 32
  %v23 = vld [vmem:[%s22] sm:$0xff]
  %v24 = vadd.f32 %v15, %v17
  %25 = vst [vmem:[%s1] sm:$0xff] %v24
  %v26 = vsub.f32 %v17, %v19
  %27 = vst [vmem:[%s2] sm:$0xff] %v26
  %v28 = vmul.f32 %v19, %v21
  %29 = vst [vmem:[%s3] sm:$0xff] %v28
  %v30 = vadd.f32 %v23, 1e-05
  %v31 = vrcp.pop %v30
  %v32 = vmul.f32 %v21, %v31
  %33 = vst [vmem:[%s4] sm:$0xff] %v32
  %vm34 = vcmp.gt.f32.partialorder %v15, %v23
  %vm35 = vmpackc.low %vm34, %vm34
  %vm36 = vmpackc.even %vm35, %vm35
  %v37 = vsel %vm36, 16843009, 0
  %38 = vst [vmem:[%s5] sm:$0x3] %v37
  // Predicated region
  $region6: #{pt_module_forward.1} parent=0 // pred_check
    _
  $region7: #{pt_module_forward.1} parent=0 // pred_check_branch
    %40 = sbr.rel (0) target = $region9
  $region8: #{pt_module_forward.1} parent=0 // pred_region
    _
  $region9: #{pt_module_forward.1} parent=0 // pred_fallthru
    _
  // Predicated region
  $region10: #{pt_module_forward.1} parent=0 // pred_check
    _
  $region11: #{pt_module_forward.1} parent=0 // pred_check_branch
    %42 = sbr.rel (0) target = $region13
  $region12: #{pt_module_forward.1} parent=0 // pred_region
    _
  $region13: #{pt_module_forward.1} parent=0 // pred_fallthru
    _
  // Predicated region
  $region14: #{pt_module_forward.1} parent=0 // pred_check
    _
  $region15: #{pt_module_forward.1} parent=0 // pred_check_branch
    %44 = sbr.rel (0) target = $region17
  $region16: #{pt_module_forward.1} parent=0 // pred_region
    _
  $region17: #{pt_module_forward.1} parent=0 // pred_fallthru
    _
  // Predicated region
  $region18: #{pt_module_forward.1} parent=0 // pred_check
    _
  $region19: #{pt_module_forward.1} parent=0 // pred_check_branch
    %46 = sbr.rel (0) target = $region21
  $region20: #{pt_module_forward.1} parent=0 // pred_region
    _
  $region21: #{pt_module_forward.1} parent=0 // pred_fallthru
    _
  // Predicated region
  $region22: #{pt_module_forward.1} parent=0 // pred_check
    _
  $region23: #{pt_module_forward.1} parent=0 // pred_check_branch
    %48 = sbr.rel (0) target = $region25
  $region24: #{pt_module_forward.1} parent=0 // pred_region
    _
  $region25: #{pt_module_forward.1} parent=0 // pred_fallthru
    _
  // Predicated region
  $region26: #{pt_module_forward.1} parent=0 // pred_check
    _
  $region27: #{pt_module_forward.1} parent=0 // pred_check_branch
    %50 = sbr.rel (0) target = $region29
  $region28: #{pt_module_forward.1} parent=0 // pred_region
    _
  $region29: #{pt_module_forward.1} parent=0 // pred_fallthru
    _
  // Predicated region
  $region30: #{pt_module_forward.1} parent=0 // pred_check
    _
  $region31: #{pt_module_forward.1} parent=0 // pred_check_branch
    %52 = sbr.rel (0) target = $region33
  $region32: #{pt_module_forward.1} parent=0 // pred_region
    _
  $region33: #{pt_module_forward.1} parent=0 // pred_fallthru
    _
  // Predicated region
  $region34: #{pt_module_forward.1} parent=0 // pred_check
    _
  $region35: #{pt_module_forward.1} parent=0 // pred_check_branch
    %54 = sbr.rel (0) target = $region37
  $region36: #{pt_module_forward.1} parent=0 // pred_region
    _
  $region37: #{pt_module_forward.1} parent=0 // pred_fallthru
    _
  // Predicated region
  $region38: #{pt_module_forward.1} parent=0 // pred_check
    _
  $region39: #{pt_module_forward.1} parent=0 // pred_check_branch
    %56 = sbr.rel (0) target = $region41
  $region40: #{pt_module_forward.1} parent=0 // pred_region
    _
  $region41: #{pt_module_forward.1} parent=0 // pred_fallthru
    _
  // Predicated region
  $region42: #{pt_module_forward.1} parent=0 // pred_check
    _
  $region43: #{pt_module_forward.1} parent=0 // pred_check_branch
    %58 = sbr.rel (0) target = $region45
  $region44: #{pt_module_forward.1} parent=0 // pred_region
    _
  $region45: #{pt_module_forward.1} parent=0 // pred_fallthru
    _

</llo_original>
